<compile_context>
chip_gen: v5e
topology: v5e:2x2
jax: 0.10.0
libtpu: 0.0.40
codegen_flags: <defaults>
</compile_context>

<pallas_src>
import math
import numpy as np
import jax
import jax.numpy as jnp
from jax.experimental import pallas as pl
from jax.experimental.pallas import tpu as pltpu


# ---------------------------------------------------------------------------
# Schedule glue (mirrors make_beta_schedule + set_new_noise_schedule)
# ---------------------------------------------------------------------------
def make_beta_schedule(schedule, n_timestep, linear_start=1e-6, linear_end=1e-2,
                       cosine_s=8e-3):
    if schedule == 'linear':
        betas = np.linspace(linear_start, linear_end, n_timestep, dtype=np.float64)
    elif schedule == 'quad':
        betas = np.linspace(linear_start ** 0.5, linear_end ** 0.5, n_timestep,
                            dtype=np.float64) ** 2
    elif schedule == 'const':
        betas = linear_end * np.ones(n_timestep, dtype=np.float64)
    elif schedule == 'cosine':
        timesteps = np.arange(n_timestep + 1, dtype=np.float64) / n_timestep + cosine_s
        alphas = np.power(np.cos(timesteps / (1 + cosine_s) * math.pi / 2), 2)
        alphas = alphas / alphas[0]
        betas = 1 - alphas[1:] / alphas[:-1]
        betas = np.clip(betas, 0, 1 - 0.001)
    else:
        raise NotImplementedError(schedule)
    return betas


# ---------------------------------------------------------------------------
# Fused Pallas kernel: q_sample + denoiser MLP + per-tile loss partial
# ---------------------------------------------------------------------------
def _make_kernel(has_noise, tile_b, d, b_actual, b_padded):
    """Build the kernel body with static config baked in via closure."""

    def body(g, x0, noise, xc_bf16, w1, b1, w2, b2, x0hat_ref, loss_ref):
        # q_sample: x_t = sqrt(g)*x_0 [+ sqrt(1-g)*noise]  (noise=None -> zeros,
        # the sqrt(1-g)*0 term vanishes and no zeros array is DMA'd).
        x_t = jnp.sqrt(g) * x0
        if noise is not None:
            x_t = x_t + jnp.sqrt(1.0 - g) * noise

        # TODO(synk): the real x0_fn is an external Denoiser/RAFTDenoiser module;
        #             this deterministic 2-layer MLP is a stand-in of the same
        #             call shape x0_hat = denoiser(x_t, x_cond).
        # Fused first layer: concat(x_t, x_cond) along lanes (both 128-aligned,
        # no cross-lane shuffle) -> one K=2D bf16 dot, f32 accumulation.
        xin = jnp.concatenate([x_t.astype(jnp.bfloat16), xc_bf16], axis=-1)
        h = jnp.dot(xin, w1, preferred_element_type=jnp.float32) + b1
        h = jnp.maximum(h, 0.0)                               # ReLU stays f32 (VPU)
        x0_hat = jnp.dot(h.astype(jnp.bfloat16), w2,
                         preferred_element_type=jnp.float32) + b2

        x0hat_ref[...] = x0_hat.astype(x0hat_ref.dtype)

        # TODO(synk): loss_fn is injected via set_loss() in the reference; MSE here.
        diff = x0_hat - x0
        diff2 = diff * diff
        if b_padded > b_actual:
            # Mask padded rows out of the SSE (only emitted when padding exists).
            rows = (pl.program_id(0) * tile_b
                    + jax.lax.broadcasted_iota(jnp.int32, (tile_b, 1), 0))
            diff2 = jnp.where(rows < b_actual, diff2, 0.0)
        # Sublane-group partial sums: (tile_b, d) -> (8, d) via static 8-row
        # slices (pure VPU vreg adds; no cross-lane XLU reduce, no broadcast
        # fill).  Lane-dense store; wrapper finishes sum(partials)/(B*D).
        part = diff2[0:8, :]
        for gi in range(1, tile_b // 8):
            part = part + diff2[gi * 8:(gi + 1) * 8, :]
        loss_ref[...] = part

    if has_noise:
        def kernel(g_ref, x0_ref, n_ref, xc_ref, w1_ref, b1_ref, w2_ref, b2_ref,
                   x0hat_ref, loss_ref):
            body(g_ref[...], x0_ref[...], n_ref[...], xc_ref[...],
                 w1_ref[...], b1_ref[...], w2_ref[...], b2_ref[...],
                 x0hat_ref, loss_ref)
    else:
        def kernel(g_ref, x0_ref, xc_ref, w1_ref, b1_ref, w2_ref, b2_ref,
                   x0hat_ref, loss_ref):
            body(g_ref[...], x0_ref[...], None, xc_ref[...],
                 w1_ref[...], b1_ref[...], w2_ref[...], b2_ref[...],
                 x0hat_ref, loss_ref)
    return kernel


# ---------------------------------------------------------------------------
# Tiling / VMEM heuristics
# ---------------------------------------------------------------------------
def _pick_batch_tile(b, *, num_cores=2, steps_per_core=4, max_tile=256):
    # Target >= steps_per_core grid steps per TensorCore (v7x shards the
    # "parallel" batch axis over 2 TCs) so the BlockSpec software pipeline
    # reaches steady state, but never drop below 64-row tiles (tiny tiles waste
    # the ~0.35us per-grid-step overhead and under-fill the MXU M dimension).
    target_steps = max(1, num_cores * steps_per_core)
    tile = -(-b // target_steps)                     # ceil(b / target_steps)
    tile = -(-tile // 16) * 16                       # 16-row aligned (bf16 packing)
    floor = min(64, -(-b // 16) * 16)                # 64 rows, or whole (small) batch
    tile = max(tile, floor)
    return min(tile, max_tile)


def _vmem_cap_bytes():
    # Stay under ~3/4 of physical per-TC VMEM on any chip (v7x: 64 MiB/TC).
    try:
        info = pltpu.get_tpu_info()
        phys = int(getattr(info, "vmem_capacity_bytes", 64 << 20))
    except Exception:
        phys = 64 << 20
    return (phys * 3) // 4


# ---------------------------------------------------------------------------
# pallas_call wrapper (gridded over the padded batch)
# ---------------------------------------------------------------------------
def _fused_qsample_denoise_loss(params, sample_gammas, x_0, x_cond, noise=None,
                                x0_hat_dtype=jnp.float32):
    b, d = x_0.shape
    hdim = params['w1'].shape[1]

    tile_b = _pick_batch_tile(b)
    b_pad = -(-b // tile_b) * tile_b
    num_tiles = b_pad // tile_b

    def pad_rows(a):
        return a if b_pad == b else jnp.pad(a, ((0, b_pad - b), (0, 0)))

    g_p = pad_rows(sample_gammas.astype(jnp.float32))
    x0_p = pad_rows(x_0.astype(jnp.float32))
    xc_p = pad_rows(x_cond).astype(jnp.bfloat16)       # stream x_cond as bf16
    has_noise = noise is not None
    if has_noise:
        n_p = pad_rows(noise.astype(jnp.float32))      # keep noise f32 (q_sample precision)

    row = lambda i: (i, 0)          # activations stream over the batch grid
    const = lambda i: (0, 0)        # weights: constant block -> VMEM-resident

    gamma_spec = pl.BlockSpec((tile_b, 1), row)
    act_spec = pl.BlockSpec((tile_b, d), row)
    w_specs = [
        pl.BlockSpec(params['w1'].shape, const),
        pl.BlockSpec(params['b1'].shape, const),
        pl.BlockSpec(params['w2'].shape, const),
        pl.BlockSpec(params['b2'].shape, const),
    ]

    if has_noise:
        in_specs = [gamma_spec, act_spec, act_spec, act_spec] + w_specs
        args = (g_p, x0_p, n_p, xc_p)
    else:
        in_specs = [gamma_spec, act_spec, act_spec] + w_specs
        args = (g_p, x0_p, xc_p)
    args = args + (params['w1'], params['b1'], params['w2'], params['b2'])

    out_shape = (jax.ShapeDtypeStruct((b_pad, d), x0_hat_dtype),
                 jax.ShapeDtypeStruct((num_tiles * 8, d), jnp.float32))
    out_specs = (pl.BlockSpec((tile_b, d), row),
                 pl.BlockSpec((8, d), row))

    kernel = _make_kernel(has_noise, tile_b, d, b, b_pad)

    # VMEM budget: double-buffered streamed tiles + weights (double-counted
    # since they are default-buffered) + slack; floor 16 MiB, cap ~3/4 physical.
    out_itemsize = jnp.dtype(x0_hat_dtype).itemsize
    w_bytes = sum(int(np.prod(params[k].shape)) * params[k].dtype.itemsize
                  for k in ('w1', 'b1', 'w2', 'b2'))
    act_in = tile_b * 4 + tile_b * d * 4 * (2 if has_noise else 1) + tile_b * d * 2
    act_out = tile_b * d * out_itemsize + 8 * d * 4
    vmem_limit = int(min(max(2 * (act_in + act_out) + 2 * w_bytes + (4 << 20),
                             16 << 20),
                         _vmem_cap_bytes()))

    flops = 2 * b_pad * (2 * d) * hdim + 2 * b_pad * hdim * d
    bytes_accessed = int(b_pad * 4 + b_pad * d * 4 * (2 if has_noise else 1)
                         + b_pad * d * 2 + w_bytes
                         + b_pad * d * out_itemsize + num_tiles * 8 * d * 4)

    x0_hat_p, loss_parts = pl.pallas_call(
        kernel,
        grid=(num_tiles,),
        in_specs=in_specs,
        out_specs=out_specs,
        out_shape=out_shape,
        compiler_params=pltpu.CompilerParams(
            dimension_semantics=("parallel",),     # batch tiles shard over v7x's 2 TCs
            vmem_limit_bytes=vmem_limit),
        cost_estimate=pl.CostEstimate(flops=flops, transcendentals=2 * b_pad,
                                      bytes_accessed=bytes_accessed),
    )(*args)

    # Finalize the cross-tile reduction: padded rows were masked in-kernel.
    loss = jnp.sum(loss_parts) / (b * d)
    x0_hat = x0_hat_p[:b] if b_pad != b else x0_hat_p
    return loss, x0_hat


def diffuser_forward(params, gammas, x_0, x_cond, key, noise=None,
                     x0_hat_dtype=jnp.float32):
    """Mirrors Diffuser.forward: returns (loss, x_0_hat)."""
    b, _ = x_0.shape
    num_timesteps = int(gammas.shape[0])

    # t ~ randint(1, num_timesteps), u ~ U(0,1)   (torch.randint / torch.rand)
    kt, ku = jax.random.split(key)
    t = jax.random.randint(kt, (b,), 1, num_timesteps)
    gamma_t1 = gammas[t - 1].reshape(b, 1)            # extract(gammas, t-1, (1,1))
    gamma_t2 = gammas[t].reshape(b, 1)                # extract(gammas, t,   (1,1))
    u = jax.random.uniform(ku, (b, 1), dtype=jnp.float32)
    sample_gammas = (gamma_t2 - gamma_t1) * u + gamma_t1

    return _fused_qsample_denoise_loss(params, sample_gammas, x_0, x_cond, noise,
                                       x0_hat_dtype=x0_hat_dtype)


# ---------------------------------------------------------------------------
# Pure-JAX reference (same bf16-at-MXU math) for sanity checking the kernel.
# ---------------------------------------------------------------------------
def diffuser_forward_ref(params, sample_gammas, x_0, x_cond, noise=None):
    if noise is None:
        noise = jnp.zeros_like(x_0)                   # default(noise, zeros_like(x_0))
    x_t = jnp.sqrt(sample_gammas) * x_0 + jnp.sqrt(1.0 - sample_gammas) * noise
    xin = jnp.concatenate([x_t.astype(jnp.bfloat16), x_cond.astype(jnp.bfloat16)],
                          axis=-1)
    h = jnp.dot(xin, params['w1'], preferred_element_type=jnp.float32) + params['b1']
    h = jnp.maximum(h, 0.0)
    x0_hat = jnp.dot(h.astype(jnp.bfloat16), params['w2'],
                     preferred_element_type=jnp.float32) + params['b2']
    loss = jnp.mean((x0_hat - x_0) ** 2)
    return loss, x0_hat


if __name__ == "__main__":
    # Small, TPU-friendly shapes: D=H=128 lanes; B=512 -> eight 64-row grid
    # steps (4 per TC on v7x) so the software pipeline reaches steady state.
    B, D, H = 512, 128, 128
    NUM_T = 100

    # Noise schedule buffers (set_new_noise_schedule, 'linear').
    betas = make_beta_schedule('linear', NUM_T, 1e-6, 1e-2)
    gammas = jnp.asarray(np.cumprod(1.0 - betas, axis=0), dtype=jnp.float32)

    key = jax.random.PRNGKey(0)
    kx, kc, kn, kw1, kw2, kfwd = jax.random.split(key, 6)

    x_0 = jax.random.normal(kx, (B, D), jnp.float32)
    x_cond = jax.random.normal(kc, (B, D), jnp.float32)
    noise = jax.random.normal(kn, (B, D), jnp.float32)

    # First-layer weight pre-fused along the contraction axis: (2D, H).
    params = {
        'w1': (jax.random.normal(kw1, (2 * D, H), jnp.float32)
               / math.sqrt(2 * D)).astype(jnp.bfloat16),
        'b1': jnp.zeros((1, H), jnp.float32),
        'w2': (jax.random.normal(kw2, (H, D), jnp.float32)
               / math.sqrt(H)).astype(jnp.bfloat16),
        'b2': jnp.zeros((1, D), jnp.float32),
    }

    # --- explicit-noise path -------------------------------------------------
    loss, x0hat = diffuser_forward(params, gammas, x_0, x_cond, kfwd, noise)
    jax.block_until_ready((loss, x0hat))

    # Recreate sample_gammas with the same key split to check against reference.
    kt, ku = jax.random.split(kfwd)
    t = jax.random.randint(kt, (B,), 1, NUM_T)
    g1 = gammas[t - 1].reshape(B, 1)
    g2 = gammas[t].reshape(B, 1)
    u = jax.random.uniform(ku, (B, 1), dtype=jnp.float32)
    sg = (g2 - g1) * u + g1

    loss_ref, x0hat_ref = diffuser_forward_ref(params, sg, x_0, x_cond, noise)
    np.testing.assert_allclose(np.asarray(x0hat), np.asarray(x0hat_ref),
                               rtol=1e-2, atol=1e-2)
    np.testing.assert_allclose(np.asarray(loss), np.asarray(loss_ref),
                               rtol=1e-2, atol=1e-2)

    # --- default-noise (noise=None => zeros, per reference q_sample) path ----
    loss0, x0hat0 = diffuser_forward(params, gammas, x_0, x_cond, kfwd, None)
    jax.block_until_ready((loss0, x0hat0))
    loss0_ref, x0hat0_ref = diffuser_forward_ref(params, sg, x_0, x_cond, None)
    np.testing.assert_allclose(np.asarray(x0hat0), np.asarray(x0hat0_ref),
                               rtol=1e-2, atol=1e-2)
    np.testing.assert_allclose(np.asarray(loss0), np.asarray(loss0_ref),
                               rtol=1e-2, atol=1e-2)

    # --- non-divisible batch: wrapper pads, kernel masks padded rows out ----
    B2 = 200
    sg2 = sg[:B2]
    loss2, x0hat2 = _fused_qsample_denoise_loss(params, sg2, x_0[:B2],
                                                x_cond[:B2], noise[:B2])
    jax.block_until_ready((loss2, x0hat2))
    loss2_ref, x0hat2_ref = diffuser_forward_ref(params, sg2, x_0[:B2],
                                                 x_cond[:B2], noise[:B2])
    np.testing.assert_allclose(np.asarray(x0hat2), np.asarray(x0hat2_ref),
                               rtol=1e-2, atol=1e-2)
    np.testing.assert_allclose(np.asarray(loss2), np.asarray(loss2_ref),
                               rtol=1e-2, atol=1e-2)

    print("KERNEL_OK")
</pallas_src>

<mosaic_0001>
module attributes {stable_mosaic.version = 11 : i64} {
  func.func @kernel(%arg0: i32, %arg1: memref<64x1xf32, #tpu.memory_space<vmem>>, %arg2: memref<64x128xf32, #tpu.memory_space<vmem>>, %arg3: memref<64x128xf32, #tpu.memory_space<vmem>>, %arg4: memref<64x128xbf16, #tpu.memory_space<vmem>>, %arg5: memref<256x128xbf16, #tpu.memory_space<vmem>>, %arg6: memref<1x128xf32, #tpu.memory_space<vmem>>, %arg7: memref<128x128xbf16, #tpu.memory_space<vmem>>, %arg8: memref<1x128xf32, #tpu.memory_space<vmem>>, %arg9: memref<64x128xf32, #tpu.memory_space<vmem>>, %arg10: memref<8x128xf32, #tpu.memory_space<vmem>>) attributes {dimension_semantics = [#tpu.dimension_semantics<parallel>], iteration_bounds = array<i64: 8>, scalar_prefetch = 0 : i64, scratch_operands = 0 : i64, tpu.core_type = #tpu.core_type<tc>, window_params = [{transform_indices = @transform_0, window_bounds = array<i64: 64, 1>}, {transform_indices = @transform_1, window_bounds = array<i64: 64, 128>}, {transform_indices = @transform_2, window_bounds = array<i64: 64, 128>}, {transform_indices = @transform_3, window_bounds = array<i64: 64, 128>}, {pipeline_mode = #tpu.pipeline_mode<synchronous>, transform_indices = @transform_4, window_bounds = array<i64: 256, 128>}, {pipeline_mode = #tpu.pipeline_mode<synchronous>, transform_indices = @transform_5, window_bounds = array<i64: 1, 128>}, {pipeline_mode = #tpu.pipeline_mode<synchronous>, transform_indices = @transform_6, window_bounds = array<i64: 128, 128>}, {pipeline_mode = #tpu.pipeline_mode<synchronous>, transform_indices = @transform_7, window_bounds = array<i64: 1, 128>}, {transform_indices = @transform_8, window_bounds = array<i64: 64, 128>}, {transform_indices = @transform_9, window_bounds = array<i64: 8, 128>}]} {
    %c0 = arith.constant 0 : index
    %c0_0 = arith.constant 0 : index
    %0 = vector.load %arg1[%c0, %c0_0] : memref<64x1xf32, #tpu.memory_space<vmem>>, vector<64x1xf32>
    %c0_1 = arith.constant 0 : index
    %c0_2 = arith.constant 0 : index
    %1 = vector.load %arg2[%c0_1, %c0_2] : memref<64x128xf32, #tpu.memory_space<vmem>>, vector<64x128xf32>
    %c0_3 = arith.constant 0 : index
    %c0_4 = arith.constant 0 : index
    %2 = vector.load %arg3[%c0_3, %c0_4] : memref<64x128xf32, #tpu.memory_space<vmem>>, vector<64x128xf32>
    %c0_5 = arith.constant 0 : index
    %c0_6 = arith.constant 0 : index
    %3 = vector.load %arg4[%c0_5, %c0_6] : memref<64x128xbf16, #tpu.memory_space<vmem>>, vector<64x128xbf16>
    %c0_7 = arith.constant 0 : index
    %c0_8 = arith.constant 0 : index
    %4 = vector.load %arg5[%c0_7, %c0_8] : memref<256x128xbf16, #tpu.memory_space<vmem>>, vector<256x128xbf16>
    %c0_9 = arith.constant 0 : index
    %c0_10 = arith.constant 0 : index
    %5 = vector.load %arg6[%c0_9, %c0_10] : memref<1x128xf32, #tpu.memory_space<vmem>>, vector<1x128xf32>
    %c0_11 = arith.constant 0 : index
    %c0_12 = arith.constant 0 : index
    %6 = vector.load %arg7[%c0_11, %c0_12] : memref<128x128xbf16, #tpu.memory_space<vmem>>, vector<128x128xbf16>
    %c0_13 = arith.constant 0 : index
    %c0_14 = arith.constant 0 : index
    %7 = vector.load %arg8[%c0_13, %c0_14] : memref<1x128xf32, #tpu.memory_space<vmem>>, vector<1x128xf32>
    %8 = math.sqrt %0 : vector<64x1xf32>
    %9 = vector.broadcast %8 : vector<64x1xf32> to vector<64x128xf32>
    %10 = arith.mulf %9, %1 : vector<64x128xf32>
    %cst = arith.constant 1.000000e+00 : f32
    %11 = vector.broadcast %cst : f32 to vector<64x1xf32>
    %12 = arith.subf %11, %0 : vector<64x1xf32>
    %13 = math.sqrt %12 : vector<64x1xf32>
    %14 = vector.broadcast %13 : vector<64x1xf32> to vector<64x128xf32>
    %15 = arith.mulf %14, %2 : vector<64x128xf32>
    %16 = arith.addf %10, %15 : vector<64x128xf32>
    %17 = arith.truncf %16 : vector<64x128xf32> to vector<64x128xbf16>
    %18 = tpu.concatenate %17, %3 in 1 : vector<64x128xbf16>, vector<64x128xbf16> -> vector<64x256xbf16>
    %cst_15 = arith.constant dense<0.000000e+00> : vector<64x128xf32>
    %19 = tpu.matmul %18, %4, %cst_15 {dimension_numbers = #tpu.dot_dimension_numbers<[1], [0], [0], [1], [0, 0, 1, 1], [], []>} : vector<64x256xbf16>, vector<256x128xbf16>, vector<64x128xf32> -> vector<64x128xf32>
    %20 = vector.broadcast %5 : vector<1x128xf32> to vector<64x128xf32>
    %21 = arith.addf %19, %20 : vector<64x128xf32>
    %cst_16 = arith.constant 0.000000e+00 : f32
    %22 = vector.broadcast %cst_16 : f32 to vector<64x128xf32>
    %23 = arith.maximumf %21, %22 : vector<64x128xf32>
    %24 = arith.truncf %23 : vector<64x128xf32> to vector<64x128xbf16>
    %cst_17 = arith.constant dense<0.000000e+00> : vector<64x128xf32>
    %25 = tpu.matmul %24, %6, %cst_17 {dimension_numbers = #tpu.dot_dimension_numbers<[1], [0], [0], [1], [0, 0, 1, 1], [], []>} : vector<64x128xbf16>, vector<128x128xbf16>, vector<64x128xf32> -> vector<64x128xf32>
    %26 = vector.broadcast %7 : vector<1x128xf32> to vector<64x128xf32>
    %27 = arith.addf %25, %26 : vector<64x128xf32>
    %c0_18 = arith.constant 0 : index
    %c0_19 = arith.constant 0 : index
    %28 = vector.load %arg9[%c0_18, %c0_19] : memref<64x128xf32, #tpu.memory_space<vmem>>, vector<64x128xf32>
    tpu.vector_store %arg9[%c0_18, %c0_19], %27 {strides = array<i32>} : memref<64x128xf32, #tpu.memory_space<vmem>>, vector<64x128xf32>,
    %29 = arith.subf %27, %1 : vector<64x128xf32>
    %30 = arith.mulf %29, %29 : vector<64x128xf32>
    %31 = vector.extract_strided_slice %30 {offsets = [0, 0], sizes = [8, 128], strides = [1, 1]} : vector<64x128xf32> to vector<8x128xf32>
    %32 = vector.extract_strided_slice %30 {offsets = [8, 0], sizes = [8, 128], strides = [1, 1]} : vector<64x128xf32> to vector<8x128xf32>
    %33 = arith.addf %31, %32 : vector<8x128xf32>
    %34 = vector.extract_strided_slice %30 {offsets = [16, 0], sizes = [8, 128], strides = [1, 1]} : vector<64x128xf32> to vector<8x128xf32>
    %35 = arith.addf %33, %34 : vector<8x128xf32>
    %36 = vector.extract_strided_slice %30 {offsets = [24, 0], sizes = [8, 128], strides = [1, 1]} : vector<64x128xf32> to vector<8x128xf32>
    %37 = arith.addf %35, %36 : vector<8x128xf32>
    %38 = vector.extract_strided_slice %30 {offsets = [32, 0], sizes = [8, 128], strides = [1, 1]} : vector<64x128xf32> to vector<8x128xf32>
    %39 = arith.addf %37, %38 : vector<8x128xf32>
    %40 = vector.extract_strided_slice %30 {offsets = [40, 0], sizes = [8, 128], strides = [1, 1]} : vector<64x128xf32> to vector<8x128xf32>
    %41 = arith.addf %39, %40 : vector<8x128xf32>
    %42 = vector.extract_strided_slice %30 {offsets = [48, 0], sizes = [8, 128], strides = [1, 1]} : vector<64x128xf32> to vector<8x128xf32>
    %43 = arith.addf %41, %42 : vector<8x128xf32>
    %44 = vector.extract_strided_slice %30 {offsets = [56, 0], sizes = [8, 128], strides = [1, 1]} : vector<64x128xf32> to vector<8x128xf32>
    %45 = arith.addf %43, %44 : vector<8x128xf32>
    %c0_20 = arith.constant 0 : index
    %c0_21 = arith.constant 0 : index
    %46 = vector.load %arg10[%c0_20, %c0_21] : memref<8x128xf32, #tpu.memory_space<vmem>>, vector<8x128xf32>
    tpu.vector_store %arg10[%c0_20, %c0_21], %45 {strides = array<i32>} : memref<8x128xf32, #tpu.memory_space<vmem>>, vector<8x128xf32>,
    return
  }
  func.func @transform_0(%arg0: i32) -> (i32, i32) {
    %c0_i32 = arith.constant 0 : i32
    %c0_i32_0 = arith.constant 0 : i32
    return %arg0, %c0_i32 : i32, i32
  }
  func.func @transform_1(%arg0: i32) -> (i32, i32) {
    %c0_i32 = arith.constant 0 : i32
    %c0_i32_0 = arith.constant 0 : i32
    return %arg0, %c0_i32 : i32, i32
  }
  func.func @transform_2(%arg0: i32) -> (i32, i32) {
    %c0_i32 = arith.constant 0 : i32
    %c0_i32_0 = arith.constant 0 : i32
    return %arg0, %c0_i32 : i32, i32
  }
  func.func @transform_3(%arg0: i32) -> (i32, i32) {
    %c0_i32 = arith.constant 0 : i32
    %c0_i32_0 = arith.constant 0 : i32
    return %arg0, %c0_i32 : i32, i32
  }
  func.func @transform_4(%arg0: i32) -> (i32, i32) {
    %c0_i32 = arith.constant 0 : i32
    %c0_i32_0 = arith.constant 0 : i32
    %c0_i32_1 = arith.constant 0 : i32
    return %c0_i32, %c0_i32_0 : i32, i32
  }
  func.func @transform_5(%arg0: i32) -> (i32, i32) {
    %c0_i32 = arith.constant 0 : i32
    %c0_i32_0 = arith.constant 0 : i32
    %c0_i32_1 = arith.constant 0 : i32
    return %c0_i32, %c0_i32_0 : i32, i32
  }
  func.func @transform_6(%arg0: i32) -> (i32, i32) {
    %c0_i32 = arith.constant 0 : i32
    %c0_i32_0 = arith.constant 0 : i32
    %c0_i32_1 = arith.constant 0 : i32
    return %c0_i32, %c0_i32_0 : i32, i32
  }
  func.func @transform_7(%arg0: i32) -> (i32, i32) {
    %c0_i32 = arith.constant 0 : i32
    %c0_i32_0 = arith.constant 0 : i32
    %c0_i32_1 = arith.constant 0 : i32
    return %c0_i32, %c0_i32_0 : i32, i32
  }
  func.func @transform_8(%arg0: i32) -> (i32, i32) {
    %c0_i32 = arith.constant 0 : i32
    %c0_i32_0 = arith.constant 0 : i32
    return %arg0, %c0_i32 : i32, i32
  }
  func.func @transform_9(%arg0: i32) -> (i32, i32) {
    %c0_i32 = arith.constant 0 : i32
    %c0_i32_0 = arith.constant 0 : i32
    return %arg0, %c0_i32 : i32, i32
  }
}

</mosaic_0001>

<llo_original>
// kernel: tpu_custom_call.1
$region0: #{tpu_custom_call.1}
  #allocation0 [shape = 'u32[]', space=smem, size = 0x4, offset = 0x4, fixed_abs, tag = 'smem constant byte address 0x4 - core index']
  #allocation1 [shape = 'u32[72,128]{1,0:T(1,128)}', space=vmem, size = 0x9000, scoped, tag = 'internal scratch']
  %s0 = inlined_call_operand.vmem [shape: f32[512,1], index: 0, kind: input, shape index: {}]
  %s1 = inlined_call_operand.vmem [shape: f32[512,128], index: 1, kind: input, shape index: {}]
  %s2 = inlined_call_operand.hbm [shape: f32[512,128], index: 2, kind: input, shape index: {}]
  %s3 = inlined_call_operand.hbm [shape: bf16[512,128], index: 3, kind: input, shape index: {}]
  %s4 = inlined_call_operand.hbm [shape: bf16[256,128], index: 4, kind: input, shape index: {}]
  %s5 = inlined_call_operand.vmem [shape: f32[1,128], index: 5, kind: input, shape index: {}]
  %s6 = inlined_call_operand.hbm [shape: bf16[128,128], index: 6, kind: input, shape index: {}]
  %s7 = inlined_call_operand.vmem [shape: f32[1,128], index: 7, kind: input, shape index: {}]
  %s8 = inlined_call_operand.hbm [shape: f32[512,128], index: 8, kind: output, shape index: {0}]
  %s9 = inlined_call_operand.hbm [shape: f32[64,128], index: 9, kind: output, shape index: {1}]
  %10 = xla_tuple %s8, %s9
  %s11 = sld [smem:[#allocation0]]
  $region89: #{tpu_custom_call.1} parent=0
    _
  %s13 = ssub.s32 1, %s11
  %s14 = scalar_select 0, %s13, %s11
  $region1: #{tpu_custom_call.1} parent=0
    #allocation2 [shape = 'u8[65536]{0}', space=vmem, size = 0x10000, scoped, tag = 'input window, operand 2']
    #allocation3 [shape = 's32[2]{0}', space=sflag, size = 0x8, scoped, tag = 'scoped memory for tpu_custom_call.1']
    #allocation4 [shape = 's32[2]{0}', space=sflag, size = 0x8, scoped, tag = 'scoped memory for tpu_custom_call.1']
    #allocation5 [shape = 'u8[32768]{0}', space=vmem, size = 0x8000, scoped, tag = 'input window, operand 3']
    #allocation6 [shape = 's32[2]{0}', space=sflag, size = 0x8, scoped, tag = 'scoped memory for tpu_custom_call.1']
    #allocation7 [shape = 'u8[65536]{0}', space=vmem, size = 0x10000, scoped, tag = 'input window, operand 4, single buffered']
    #allocation8 [shape = 'u8[32768]{0}', space=vmem, size = 0x8000, scoped, tag = 'input window, operand 6, single buffered']
    #allocation9 [shape = 's32[1]{0}', space=sflag, size = 0x4, scoped, tag = 'scoped memory for tpu_custom_call.1']
    #allocation10 [shape = 'u8[65536]{0}', space=vmem, size = 0x10000, scoped, tag = 'output window, operand 0']
    #allocation11 [shape = 'u8[8192]{0}', space=vmem, size = 0x2000, scoped, tag = 'output window, operand 1']
    #allocation12 [shape = 's32[2]{0}', space=sflag, size = 0x8, scoped, tag = 'scoped memory for tpu_custom_call.1']
    %15 = vsyncpa [#allocation3], 0
    %s16 = scalar_lea.sflag [#allocation3], 1
    %17 = vsyncpa %s16, 0
    %18 = vsyncpa [#allocation6], 0
    %s19 = scalar_lea.sflag [#allocation6], 1
    %20 = vsyncpa %s19, 0
    %21 = vsyncpa [#allocation9], 0
    %22 = vsyncpa [#allocation4], 0
    %s23 = scalar_lea.sflag [#allocation4], 1
    %24 = vsyncpa %s23, 0
    %25 = vsyncpa [#allocation12], 0
    %s26 = scalar_lea.sflag [#allocation12], 1
    %27 = vsyncpa %s26, 0
    loop: start=0, step=1, limit=10
    $region2: #{tpu_custom_call.1} parent=1 // loop_pre_header
      _
    $region3: #{tpu_custom_call.1} parent=1 // loop_header
      %s29 = sphi 0, %s33
      %p30 = scmp.ge.s32.totalorder %s29, 10
      %s39 = sphi 0, %s41
      %s42 = sphi 0, %s39
      %s43 = sphi 0, %s42
      %s59 = sphi 0, %s43
      %s65 = sphi 0, %s67
      %s68 = sphi 0, %s65
      %s69 = sphi 0, %s68
      %s85 = sphi 0, %s69
      %s91 = sphi 0, %s93
      %s94 = sphi 0, %s91
      %s95 = sphi 0, %s94
      %s111 = sphi 0, %s95
      %s117 = sphi 0, %s119
      %s120 = sphi 0, %s117
      %s121 = sphi 0, %s120
      %s137 = sphi 0, %s121
      %s141 = sphi 0, %s141
      %s143 = sphi 0, %s141
      %s144 = sphi 0, %s143
      %s158 = sphi 0, %s144
      %s162 = sphi 0, %s162
      %s164 = sphi 0, %s162
      %s165 = sphi 0, %s164
      %s179 = sphi 0, %s165
      %s183 = sphi 0, %s183
      %s185 = sphi 0, %s183
      %s186 = sphi 0, %s185
      %s200 = sphi 0, %s186
      %s204 = sphi 0, %s204
      %s206 = sphi 0, %s204
      %s207 = sphi 0, %s206
      %s221 = sphi 0, %s207
      %s227 = sphi 0, %s229
      %s230 = sphi 0, %s227
      %s231 = sphi 0, %s230
      %s247 = sphi 0, %s231
      %s253 = sphi 0, %s255
      %s256 = sphi 0, %s253
      %s257 = sphi 0, %s256
      %s273 = sphi 0, %s257
    $region4: #{tpu_custom_call.1} parent=1 // loop_header_branch
      %32 = sbr.rel (%p30) target = $region8
    $region5: #{tpu_custom_call.1} parent=1 // loop_body
      %s34 = ssub.s32 %s29, 1
      %s35 = ssub.s32 %s29, 2
      %s36 = sadd.s32 %s29, 1
      %s37 = ssub.s32 %s29, %s36
      %p38 = scmp.eq.s32.totalorder %s37, 0
      %s40 = sadd.s32 %s39, 1
      %s41 = scalar_select %p38, %s39, %s40
      %p44 = pneg %p38
      %p45 = scmp.eq.s32.totalorder %s29, 7
      %p46 = por %p44, %p45
      %p47 = scmp.ne.s32.totalorder %s39, %s42
      %p48 = scmp.eq.s32.totalorder %s29, 0
      %p49 = por %p47, %p48
      %p50 = scmp.ne.s32.totalorder %s39, %s42
      %p51 = scmp.eq.s32.totalorder %s34, 7
      %p52 = por %p50, %p51
      %p53 = scmp.ne.s32.totalorder %s42, %s43
      %p54 = scmp.eq.s32.totalorder %s34, 0
      %p55 = por %p53, %p54
      %p56 = scmp.ne.s32.totalorder %s42, %s43
      %p57 = scmp.eq.s32.totalorder %s35, 7
      %p58 = por %p56, %p57
      %p60 = scmp.ne.s32.totalorder %s43, %s59
      %p61 = scmp.eq.s32.totalorder %s35, 0
      %p62 = por %p60, %p61
      %s63 = ssub.s32 %s29, %s36
      %p64 = scmp.eq.s32.totalorder %s63, 0
      %s66 = sadd.s32 %s65, 1
      %s67 = scalar_select %p64, %s65, %s66
      %p70 = pneg %p64
      %p71 = scmp.eq.s32.totalorder %s29, 7
      %p72 = por %p70, %p71
      %p73 = scmp.ne.s32.totalorder %s65, %s68
      %p74 = scmp.eq.s32.totalorder %s29, 0
      %p75 = por %p73, %p74
      %p76 = scmp.ne.s32.totalorder %s65, %s68
      %p77 = scmp.eq.s32.totalorder %s34, 7
      %p78 = por %p76, %p77
      %p79 = scmp.ne.s32.totalorder %s68, %s69
      %p80 = scmp.eq.s32.totalorder %s34, 0
      %p81 = por %p79, %p80
      %p82 = scmp.ne.s32.totalorder %s68, %s69
      %p83 = scmp.eq.s32.totalorder %s35, 7
      %p84 = por %p82, %p83
      %p86 = scmp.ne.s32.totalorder %s69, %s85
      %p87 = scmp.eq.s32.totalorder %s35, 0
      %p88 = por %p86, %p87
      %s89 = ssub.s32 %s29, %s36
      %p90 = scmp.eq.s32.totalorder %s89, 0
      %s92 = sadd.s32 %s91, 1
      %s93 = scalar_select %p90, %s91, %s92
      %p96 = pneg %p90
      %p97 = scmp.eq.s32.totalorder %s29, 7
      %p98 = por %p96, %p97
      %p99 = scmp.ne.s32.totalorder %s91, %s94
      %p100 = scmp.eq.s32.totalorder %s29, 0
      %p101 = por %p99, %p100
      %p102 = scmp.ne.s32.totalorder %s91, %s94
      %p103 = scmp.eq.s32.totalorder %s34, 7
      %p104 = por %p102, %p103
      %p105 = scmp.ne.s32.totalorder %s94, %s95
      %p106 = scmp.eq.s32.totalorder %s34, 0
      %p107 = por %p105, %p106
      %p108 = scmp.ne.s32.totalorder %s94, %s95
      %p109 = scmp.eq.s32.totalorder %s35, 7
      %p110 = por %p108, %p109
      %p112 = scmp.ne.s32.totalorder %s95, %s111
      %p113 = scmp.eq.s32.totalorder %s35, 0
      %p114 = por %p112, %p113
      %s115 = ssub.s32 %s29, %s36
      %p116 = scmp.eq.s32.totalorder %s115, 0
      %s118 = sadd.s32 %s117, 1
      %s119 = scalar_select %p116, %s117, %s118
      %p122 = pneg %p116
      %p123 = scmp.eq.s32.totalorder %s29, 7
      %p124 = por %p122, %p123
      %p125 = scmp.ne.s32.totalorder %s117, %s120
      %p126 = scmp.eq.s32.totalorder %s29, 0
      %p127 = por %p125, %p126
      %p128 = scmp.ne.s32.totalorder %s117, %s120
      %p129 = scmp.eq.s32.totalorder %s34, 7
      %p130 = por %p128, %p129
      %p131 = scmp.ne.s32.totalorder %s120, %s121
      %p132 = scmp.eq.s32.totalorder %s34, 0
      %p133 = por %p131, %p132
      %p134 = scmp.ne.s32.totalorder %s120, %s121
      %p135 = scmp.eq.s32.totalorder %s35, 7
      %p136 = por %p134, %p135
      %p138 = scmp.ne.s32.totalorder %s121, %s137
      %p139 = scmp.eq.s32.totalorder %s35, 0
      %p140 = por %p138, %p139
      %s142 = sadd.s32 %s141, 1
      %p145 = scmp.eq.s32.totalorder %s29, 7
      %p146 = scmp.ne.s32.totalorder %s141, %s143
      %p147 = scmp.eq.s32.totalorder %s29, 0
      %p148 = por %p146, %p147
      %p149 = scmp.ne.s32.totalorder %s141, %s143
      %p150 = scmp.eq.s32.totalorder %s34, 7
      %p151 = por %p149, %p150
      %p152 = scmp.ne.s32.totalorder %s143, %s144
      %p153 = scmp.eq.s32.totalorder %s34, 0
      %p154 = por %p152, %p153
      %p155 = scmp.ne.s32.totalorder %s143, %s144
      %p156 = scmp.eq.s32.totalorder %s35, 7
      %p157 = por %p155, %p156
      %p159 = scmp.ne.s32.totalorder %s144, %s158
      %p160 = scmp.eq.s32.totalorder %s35, 0
      %p161 = por %p159, %p160
      %s163 = sadd.s32 %s162, 1
      %p166 = scmp.eq.s32.totalorder %s29, 7
      %p167 = scmp.ne.s32.totalorder %s162, %s164
      %p168 = scmp.eq.s32.totalorder %s29, 0
      %p169 = por %p167, %p168
      %p170 = scmp.ne.s32.totalorder %s162, %s164
      %p171 = scmp.eq.s32.totalorder %s34, 7
      %p172 = por %p170, %p171
      %p173 = scmp.ne.s32.totalorder %s164, %s165
      %p174 = scmp.eq.s32.totalorder %s34, 0
      %p175 = por %p173, %p174
      %p176 = scmp.ne.s32.totalorder %s164, %s165
      %p177 = scmp.eq.s32.totalorder %s35, 7
      %p178 = por %p176, %p177
      %p180 = scmp.ne.s32.totalorder %s165, %s179
      %p181 = scmp.eq.s32.totalorder %s35, 0
      %p182 = por %p180, %p181
      %s184 = sadd.s32 %s183, 1
      %p187 = scmp.eq.s32.totalorder %s29, 7
      %p188 = scmp.ne.s32.totalorder %s183, %s185
      %p189 = scmp.eq.s32.totalorder %s29, 0
      %p190 = por %p188, %p189
      %p191 = scmp.ne.s32.totalorder %s183, %s185
      %p192 = scmp.eq.s32.totalorder %s34, 7
      %p193 = por %p191, %p192
      %p194 = scmp.ne.s32.totalorder %s185, %s186
      %p195 = scmp.eq.s32.totalorder %s34, 0
      %p196 = por %p194, %p195
      %p197 = scmp.ne.s32.totalorder %s185, %s186
      %p198 = scmp.eq.s32.totalorder %s35, 7
      %p199 = por %p197, %p198
      %p201 = scmp.ne.s32.totalorder %s186, %s200
      %p202 = scmp.eq.s32.totalorder %s35, 0
      %p203 = por %p201, %p202
      %s205 = sadd.s32 %s204, 1
      %p208 = scmp.eq.s32.totalorder %s29, 7
      %p209 = scmp.ne.s32.totalorder %s204, %s206
      %p210 = scmp.eq.s32.totalorder %s29, 0
      %p211 = por %p209, %p210
      %p212 = scmp.ne.s32.totalorder %s204, %s206
      %p213 = scmp.eq.s32.totalorder %s34, 7
      %p214 = por %p212, %p213
      %p215 = scmp.ne.s32.totalorder %s206, %s207
      %p216 = scmp.eq.s32.totalorder %s34, 0
      %p217 = por %p215, %p216
      %p218 = scmp.ne.s32.totalorder %s206, %s207
      %p219 = scmp.eq.s32.totalorder %s35, 7
      %p220 = por %p218, %p219
      %p222 = scmp.ne.s32.totalorder %s207, %s221
      %p223 = scmp.eq.s32.totalorder %s35, 0
      %p224 = por %p222, %p223
      %s225 = ssub.s32 %s29, %s36
      %p226 = scmp.eq.s32.totalorder %s225, 0
      %s228 = sadd.s32 %s227, 1
      %s229 = scalar_select %p226, %s227, %s228
      %p232 = pneg %p226
      %p233 = scmp.eq.s32.totalorder %s29, 7
      %p234 = por %p232, %p233
      %p235 = scmp.ne.s32.totalorder %s227, %s230
      %p236 = scmp.eq.s32.totalorder %s29, 0
      %p237 = por %p235, %p236
      %p238 = scmp.ne.s32.totalorder %s227, %s230
      %p239 = scmp.eq.s32.totalorder %s34, 7
      %p240 = por %p238, %p239
      %p241 = scmp.ne.s32.totalorder %s230, %s231
      %p242 = scmp.eq.s32.totalorder %s34, 0
      %p243 = por %p241, %p242
      %p244 = scmp.ne.s32.totalorder %s230, %s231
      %p245 = scmp.eq.s32.totalorder %s35, 7
      %p246 = por %p244, %p245
      %p248 = scmp.ne.s32.totalorder %s231, %s247
      %p249 = scmp.eq.s32.totalorder %s35, 0
      %p250 = por %p248, %p249
      %s251 = ssub.s32 %s29, %s36
      %p252 = scmp.eq.s32.totalorder %s251, 0
      %s254 = sadd.s32 %s253, 1
      %s255 = scalar_select %p252, %s253, %s254
      %p258 = pneg %p252
      %p259 = scmp.eq.s32.totalorder %s29, 7
      %p260 = por %p258, %p259
      %p261 = scmp.ne.s32.totalorder %s253, %s256
      %p262 = scmp.eq.s32.totalorder %s29, 0
      %p263 = por %p261, %p262
      %p264 = scmp.ne.s32.totalorder %s253, %s256
      %p265 = scmp.eq.s32.totalorder %s34, 7
      %p266 = por %p264, %p265
      %p267 = scmp.ne.s32.totalorder %s256, %s257
      %p268 = scmp.eq.s32.totalorder %s34, 0
      %p269 = por %p267, %p268
      %p270 = scmp.ne.s32.totalorder %s256, %s257
      %p271 = scmp.eq.s32.totalorder %s35, 7
      %p272 = por %p270, %p271
      %p274 = scmp.ne.s32.totalorder %s257, %s273
      %p275 = scmp.eq.s32.totalorder %s35, 0
      %p276 = por %p274, %p275
      %p277 = scmp.le.s32.totalorder 1, %s29
      %p278 = scmp.lt.s32.totalorder %s29, 9
      %p279 = pnand %p277, %p278
      %p280 = pneg %p279
      // Predicated region
      $region9: #{tpu_custom_call.1} parent=5 // pred_check
        _
      $region10: #{tpu_custom_call.1} parent=5 // pred_check_branch
        %282 = sbr.rel (%p279) target = $region12
      $region11: #{tpu_custom_call.1} parent=5 // pred_region
        %s283 = ssub.s32 %s29, 1
        // Predicated region
        $region13: #{tpu_custom_call.1} parent=11 // pred_check
          %p284 = pneg %p154
        $region14: #{tpu_custom_call.1} parent=11 // pred_check_branch
          %286 = sbr.rel (%p284) target = $region16
        $region15: #{tpu_custom_call.1} parent=11 // pred_region
          %288 = vsyncadd [#allocation6], 0
          %s289 = sshll.u32 %s4, 4
          %s290 = int_to_ptr.hbm [resolvable:$true] %s289
          %s291 = sshll.u32 [#allocation7], 4
          %s292 = int_to_ptr.vmem [resolvable:$true] %s291
          %297 = dma.hbm_to_vmem [thread:$0]  %s290, 2048, %s292, [#allocation6], 64, 64, 4
        $region16: #{tpu_custom_call.1} parent=11 // pred_fallthru
          _
        // Predicated region
        $region17: #{tpu_custom_call.1} parent=11 // pred_check
          %p298 = pneg %p175
        $region18: #{tpu_custom_call.1} parent=11 // pred_check_branch
          %300 = sbr.rel (%p298) target = $region20
        $region19: #{tpu_custom_call.1} parent=11 // pred_region
          _
        $region20: #{tpu_custom_call.1} parent=11 // pred_fallthru
          _
        // Predicated region
        $region21: #{tpu_custom_call.1} parent=11 // pred_check
          %p301 = pneg %p196
        $region22: #{tpu_custom_call.1} parent=11 // pred_check_branch
          %303 = sbr.rel (%p301) target = $region24
        $region23: #{tpu_custom_call.1} parent=11 // pred_region
          %305 = vsyncadd [#allocation9], 0
          %s306 = sshll.u32 %s6, 4
          %s307 = int_to_ptr.hbm [resolvable:$true] %s306
          %s308 = sshll.u32 [#allocation8], 4
          %s309 = int_to_ptr.vmem [resolvable:$true] %s308
          %314 = dma.hbm_to_vmem [thread:$0]  %s307, 1024, %s309, [#allocation9], 64, 64, 4
        $region24: #{tpu_custom_call.1} parent=11 // pred_fallthru
          _
        // Predicated region
        $region25: #{tpu_custom_call.1} parent=11 // pred_check
          %p315 = pneg %p217
        $region26: #{tpu_custom_call.1} parent=11 // pred_check_branch
          %317 = sbr.rel (%p315) target = $region28
        $region27: #{tpu_custom_call.1} parent=11 // pred_region
          _
        $region28: #{tpu_custom_call.1} parent=11 // pred_fallthru
          _
      $region12: #{tpu_custom_call.1} parent=5 // pred_fallthru
        _
      %p318 = scmp.lt.s32.totalorder %s29, 8
      // Predicated region
      $region29: #{tpu_custom_call.1} parent=5 // pred_check
        %p319 = pneg %p318
      $region30: #{tpu_custom_call.1} parent=5 // pred_check_branch
        %321 = sbr.rel (%p319) target = $region32
      $region31: #{tpu_custom_call.1} parent=5 // pred_region
        // Predicated region
        $region33: #{tpu_custom_call.1} parent=31 // pred_check
          %p322 = pneg %p49
        $region34: #{tpu_custom_call.1} parent=31 // pred_check_branch
          %324 = sbr.rel (%p322) target = $region36
        $region35: #{tpu_custom_call.1} parent=31 // pred_region
          %s325 = smul.u32 8, %s29
          %p326 = scmp.lt.s32.totalorder %s325, 63
          %s327 = scalar_select %p326, %s325, 63
          %s328 = smul.addr %s327, 8
          %s329 = scalar_lea.vmem %s0, %s328
          %s330 = smul.u32 8, %s29
        $region36: #{tpu_custom_call.1} parent=31 // pred_fallthru
          _
        // Predicated region
        $region37: #{tpu_custom_call.1} parent=31 // pred_check
          %p331 = pneg %p75
        $region38: #{tpu_custom_call.1} parent=31 // pred_check_branch
          %333 = sbr.rel (%p331) target = $region40
        $region39: #{tpu_custom_call.1} parent=31 // pred_region
          %s334 = smul.u32 8, %s29
          %p335 = scmp.lt.s32.totalorder %s334, 63
          %s336 = scalar_select %p335, %s334, 63
          %s337 = smul.addr %s336, 8
          %s338 = scalar_lea.vmem %s1, %s337
          %s339 = smul.u32 8, %s29
        $region40: #{tpu_custom_call.1} parent=31 // pred_fallthru
          _
        // Predicated region
        $region41: #{tpu_custom_call.1} parent=31 // pred_check
          %p340 = pneg %p101
        $region42: #{tpu_custom_call.1} parent=31 // pred_check_branch
          %342 = sbr.rel (%p340) target = $region44
        $region43: #{tpu_custom_call.1} parent=31 // pred_region
          %s343 = sand.u32 %s91, 1
          %s344 = scalar_lea.sflag [#allocation3], %s343
          %s345 = sand.u32 %s91, 1
          %s346 = smul.addr %s345, 64
          %s347 = scalar_lea.vmem [#allocation2], %s346
          %s348 = smul.u32 8, %s29
          %350 = vsyncadd %s344, 0
          %s351 = smul.addr %s348, 8
          %s352 = scalar_lea.hbm %s2, %s351
          %s353 = sshll.u32 %s352, 4
          %s354 = int_to_ptr.hbm [resolvable:$true] %s353
          %s355 = sshll.u32 %s347, 4
          %s356 = int_to_ptr.vmem [resolvable:$true] %s355
          %361 = dma.hbm_to_vmem [thread:$0]  %s354, 1024, %s356, %s344, 128, 128, 8
        $region44: #{tpu_custom_call.1} parent=31 // pred_fallthru
          _
        // Predicated region
        $region45: #{tpu_custom_call.1} parent=31 // pred_check
          %p362 = pneg %p127
        $region46: #{tpu_custom_call.1} parent=31 // pred_check_branch
          %364 = sbr.rel (%p362) target = $region48
        $region47: #{tpu_custom_call.1} parent=31 // pred_region
          %s365 = sand.u32 %s29, 1
          %s366 = scalar_lea.sflag [#allocation6], %s365
          %s367 = sand.u32 %s117, 1
          %s368 = smul.addr %s367, 32
          %s369 = scalar_lea.vmem [#allocation5], %s368
          %s370 = smul.u32 8, %s29
          %372 = vsyncadd %s366, 0
          %s373 = smul.addr %s370, 4
          %s374 = scalar_lea.hbm %s3, %s373
          %s375 = sshll.u32 %s374, 4
          %s376 = int_to_ptr.hbm [resolvable:$true] %s375
          %s377 = sshll.u32 %s369, 4
          %s378 = int_to_ptr.vmem [resolvable:$true] %s377
          %383 = dma.hbm_to_vmem [thread:$0]  %s376, 512, %s378, %s366, 64, 64, 4
        $region48: #{tpu_custom_call.1} parent=31 // pred_fallthru
          _
      $region32: #{tpu_custom_call.1} parent=5 // pred_fallthru
        _
      %p384 = scmp.le.s32.totalorder 1, %s29
      %p385 = scmp.lt.s32.totalorder %s29, 9
      %p386 = pnand %p384, %p385
      %p387 = pneg %p386
      // Predicated region
      $region49: #{tpu_custom_call.1} parent=5 // pred_check
        _
      $region50: #{tpu_custom_call.1} parent=5 // pred_check_branch
        %389 = sbr.rel (%p386) target = $region52
      $region51: #{tpu_custom_call.1} parent=5 // pred_region
        %s390 = ssub.s32 %s29, 1
        %s391 = sand.u32 %s94, 1
        %s392 = scalar_lea.sflag [#allocation3], %s391
        %s393 = sand.u32 %s94, 1
        %s394 = smul.addr %s393, 64
        %s395 = scalar_lea.vmem [#allocation2], %s394
        // Predicated region
        $region53: #{tpu_custom_call.1} parent=51 // pred_check
          %p396 = pneg %p107
        $region54: #{tpu_custom_call.1} parent=51 // pred_check_branch
          %398 = sbr.rel (%p396) target = $region56
        $region55: #{tpu_custom_call.1} parent=51 // pred_region
          %400 = dma.done %s392, 1024
        $region56: #{tpu_custom_call.1} parent=51 // pred_fallthru
          _
        %s401 = sand.u32 %s34, 1
        %s402 = scalar_lea.sflag [#allocation6], %s401
        %s403 = sand.u32 %s120, 1
        %s404 = smul.addr %s403, 32
        %s405 = scalar_lea.vmem [#allocation5], %s404
        // Predicated region
        $region57: #{tpu_custom_call.1} parent=51 // pred_check
          %p406 = pneg %p133
        $region58: #{tpu_custom_call.1} parent=51 // pred_check_branch
          %408 = sbr.rel (%p406) target = $region60
        $region59: #{tpu_custom_call.1} parent=51 // pred_region
          %410 = dma.done %s402, 512
        $region60: #{tpu_custom_call.1} parent=51 // pred_fallthru
          _
        // Predicated region
        $region61: #{tpu_custom_call.1} parent=51 // pred_check
          %p411 = pneg %p154
        $region62: #{tpu_custom_call.1} parent=51 // pred_check_branch
          %413 = sbr.rel (%p411) target = $region64
        $region63: #{tpu_custom_call.1} parent=51 // pred_region
          %415 = dma.done [#allocation6], 2048
        $region64: #{tpu_custom_call.1} parent=51 // pred_fallthru
          _
        // Predicated region
        $region65: #{tpu_custom_call.1} parent=51 // pred_check
          %p416 = pneg %p196
        $region66: #{tpu_custom_call.1} parent=51 // pred_check_branch
          %418 = sbr.rel (%p416) target = $region68
        $region67: #{tpu_custom_call.1} parent=51 // pred_region
          %420 = dma.done [#allocation9], 1024
        $region68: #{tpu_custom_call.1} parent=51 // pred_fallthru
          _
        %s421 = smul.u32 8, %s34
        %p422 = scmp.lt.s32.totalorder %s421, 63
        %s423 = scalar_select %p422, %s421, 63
        %s424 = smul.addr %s423, 8
        %s425 = scalar_lea.vmem %s0, %s424
        %p426 = pneg %p55
        %p427 = pneg %p52
        %s428 = smul.u32 8, %s34
        %p429 = scmp.lt.s32.totalorder %s428, 63
        %s430 = scalar_select %p429, %s428, 63
        %s431 = smul.addr %s430, 8
        %s432 = scalar_lea.vmem %s1, %s431
        %p433 = pneg %p81
        %p434 = pneg %p78
        %s435 = sand.u32 %s94, 1
        %s436 = scalar_lea.sflag [#allocation3], %s435
        %s437 = sand.u32 %s94, 1
        %s438 = smul.addr %s437, 64
        %s439 = scalar_lea.vmem [#allocation2], %s438
        %p440 = pneg %p107
        %p441 = pneg %p104
        %s442 = sand.u32 %s34, 1
        %s443 = scalar_lea.sflag [#allocation6], %s442
        %s444 = sand.u32 %s120, 1
        %s445 = smul.addr %s444, 32
        %s446 = scalar_lea.vmem [#allocation5], %s445
        %p447 = pneg %p133
        %p448 = pneg %p130
        %p449 = pneg %p154
        %p450 = pneg %p151
        %p451 = pneg %p175
        %p452 = pneg %p172
        %p453 = pneg %p196
        %p454 = pneg %p193
        %p455 = pneg %p217
        %p456 = pneg %p214
        %p457 = pneg %p243
        %p458 = pneg %p240
        %s459 = sand.u32 %s230, 1
        %s460 = scalar_lea.sflag [#allocation4], %s459
        %s461 = sand.u32 %s230, 1
        %s462 = smul.addr %s461, 64
        %s463 = scalar_lea.vmem [#allocation10], %s462
        %p464 = pneg %p269
        %p465 = pneg %p266
        %s466 = sand.u32 %s256, 1
        %s467 = scalar_lea.sflag [#allocation12], %s466
        %s468 = sand.u32 %s256, 1
        %s469 = smul.addr %s468, 8
        %s470 = scalar_lea.vmem [#allocation11], %s469
        %s471 = smul.u32 8, %s34
        %p472 = scmp.lt.s32.totalorder %s471, 63
        %s473 = scalar_select %p472, %s471, 63
        %s474 = smul.addr %s473, 8
        %s475 = scalar_lea.vmem %s0, %s474
        %s476 = smul.u32 8, %s34
        %s477 = smul.u32 8, %s34
        %p478 = scmp.lt.s32.totalorder %s477, 63
        %s479 = scalar_select %p478, %s477, 63
        %s480 = smul.addr %s479, 8
        %s481 = scalar_lea.vmem %s1, %s480
        %s482 = smul.u32 8, %s34
        %s483 = smul.u32 8, %s34
        %s484 = smul.u32 8, %s34
        %s485 = smul.u32 8, %s34
        %v486 = vld [vmem:[%s475] sm:$0xff]
        %v487 = vld [vmem:[%s475 + $0x8] sm:$0xff]
        %v488 = vld [vmem:[%s475 + $0x10] sm:$0xff]
        %v489 = vld [vmem:[%s475 + $0x18] sm:$0xff]
        %v490 = vld [vmem:[%s475 + $0x20] sm:$0xff]
        %v491 = vld [vmem:[%s475 + $0x28] sm:$0xff]
        %v492 = vld [vmem:[%s475 + $0x30] sm:$0xff]
        %v493 = vld [vmem:[%s475 + $0x38] sm:$0xff]
        %v494 = vld [vmem:[%s481] sm:$0xff]
        %v495 = vld [vmem:[%s481 + $0x8] sm:$0xff]
        %v496 = vld [vmem:[%s481 + $0x10] sm:$0xff]
        %v497 = vld [vmem:[%s481 + $0x18] sm:$0xff]
        %v498 = vld [vmem:[%s481 + $0x20] sm:$0xff]
        %v499 = vld [vmem:[%s481 + $0x28] sm:$0xff]
        %v500 = vld [vmem:[%s481 + $0x30] sm:$0xff]
        %v501 = vld [vmem:[%s481 + $0x38] sm:$0xff]
        %v502 = vld [vmem:[%s395] sm:$0xff]
        %v503 = vld [vmem:[%s395 + $0x8] sm:$0xff]
        %v504 = vld [vmem:[%s395 + $0x10] sm:$0xff]
        %v505 = vld [vmem:[%s395 + $0x18] sm:$0xff]
        %v506 = vld [vmem:[%s395 + $0x20] sm:$0xff]
        %v507 = vld [vmem:[%s395 + $0x28] sm:$0xff]
        %v508 = vld [vmem:[%s395 + $0x30] sm:$0xff]
        %v509 = vld [vmem:[%s395 + $0x38] sm:$0xff]
        %v510 = vld [vmem:[%s405] sm:$0xf]
        %v511 = vld [vmem:[%s405 + $0x4] sm:$0xf]
        %v512 = vld [vmem:[%s405 + $0x8] sm:$0xf]
        %v513 = vld [vmem:[%s405 + $0xc] sm:$0xf]
        %v514 = vld [vmem:[%s405 + $0x10] sm:$0xf]
        %v515 = vld [vmem:[%s405 + $0x14] sm:$0xf]
        %v516 = vld [vmem:[%s405 + $0x18] sm:$0xf]
        %v517 = vld [vmem:[%s405 + $0x1c] sm:$0xf]
        %v518 = vld [vmem:[#allocation7] sm:$0xf]
        %v519 = vld [vmem:[#allocation7 + $0x4] sm:$0xf]
        %v520 = vld [vmem:[#allocation7 + $0x8] sm:$0xf]
        %v521 = vld [vmem:[#allocation7 + $0xc] sm:$0xf]
        %v522 = vld [vmem:[#allocation7 + $0x10] sm:$0xf]
        %v523 = vld [vmem:[#allocation7 + $0x14] sm:$0xf]
        %v524 = vld [vmem:[#allocation7 + $0x18] sm:$0xf]
        %v525 = vld [vmem:[#allocation7 + $0x1c] sm:$0xf]
        %v526 = vld [vmem:[#allocation7 + $0x20] sm:$0xf]
        %v527 = vld [vmem:[#allocation7 + $0x24] sm:$0xf]
        %v528 = vld [vmem:[#allocation7 + $0x28] sm:$0xf]
        %v529 = vld [vmem:[#allocation7 + $0x2c] sm:$0xf]
        %v530 = vld [vmem:[#allocation7 + $0x30] sm:$0xf]
        %v531 = vld [vmem:[#allocation7 + $0x34] sm:$0xf]
        %v532 = vld [vmem:[#allocation7 + $0x38] sm:$0xf]
        %v533 = vld [vmem:[#allocation7 + $0x3c] sm:$0xf]
        %v534 = vld [vmem:[#allocation7 + $0x40] sm:$0xf]
        %v535 = vld [vmem:[#allocation7 + $0x44] sm:$0xf]
        %v536 = vld [vmem:[#allocation7 + $0x48] sm:$0xf]
        %v537 = vld [vmem:[#allocation7 + $0x4c] sm:$0xf]
        %v538 = vld [vmem:[#allocation7 + $0x50] sm:$0xf]
        %v539 = vld [vmem:[#allocation7 + $0x54] sm:$0xf]
        %v540 = vld [vmem:[#allocation7 + $0x58] sm:$0xf]
        %v541 = vld [vmem:[#allocation7 + $0x5c] sm:$0xf]
        %v542 = vld [vmem:[#allocation7 + $0x60] sm:$0xf]
        %v543 = vld [vmem:[#allocation7 + $0x64] sm:$0xf]
        %v544 = vld [vmem:[#allocation7 + $0x68] sm:$0xf]
        %v545 = vld [vmem:[#allocation7 + $0x6c] sm:$0xf]
        %v546 = vld [vmem:[#allocation7 + $0x70] sm:$0xf]
        %v547 = vld [vmem:[#allocation7 + $0x74] sm:$0xf]
        %v548 = vld [vmem:[#allocation7 + $0x78] sm:$0xf]
        %v549 = vld [vmem:[#allocation7 + $0x7c] sm:$0xf]
        %v550 = vld [vmem:[%s5] sm:$0x1]
        %v551 = vld [vmem:[#allocation8] sm:$0xf]
        %v552 = vld [vmem:[#allocation8 + $0x4] sm:$0xf]
        %v553 = vld [vmem:[#allocation8 + $0x8] sm:$0xf]
        %v554 = vld [vmem:[#allocation8 + $0xc] sm:$0xf]
        %v555 = vld [vmem:[#allocation8 + $0x10] sm:$0xf]
        %v556 = vld [vmem:[#allocation8 + $0x14] sm:$0xf]
        %v557 = vld [vmem:[#allocation8 + $0x18] sm:$0xf]
        %v558 = vld [vmem:[#allocation8 + $0x1c] sm:$0xf]
        %v559 = vld [vmem:[#allocation8 + $0x20] sm:$0xf]
        %v560 = vld [vmem:[#allocation8 + $0x24] sm:$0xf]
        %v561 = vld [vmem:[#allocation8 + $0x28] sm:$0xf]
        %v562 = vld [vmem:[#allocation8 + $0x2c] sm:$0xf]
        %v563 = vld [vmem:[#allocation8 + $0x30] sm:$0xf]
        %v564 = vld [vmem:[#allocation8 + $0x34] sm:$0xf]
        %v565 = vld [vmem:[#allocation8 + $0x38] sm:$0xf]
        %v566 = vld [vmem:[#allocation8 + $0x3c] sm:$0xf]
        %v567 = vld [vmem:[%s7] sm:$0x1]
        %v568 = vrsqrt.pop %v486
        %v569 = vmul.f32 %v568, %v486
        %v570 = vmul.f32 %v569, %v568
        %v571 = vmul.f32 0.5, %v570
        %v572 = vsub.f32 1.5, %v571
        %v573 = vmul.f32 %v568, %v572
        %v574 = vmul.f32 %v486, %v573
        %vm575 = vcmp.eq.f32.partialorder %v486, inf
        %v576 = vsel %vm575, %v486, %v574
        %vm577 = vcmp.eq.f32.partialorder %v486, 0.0
        %v578 = vand.u32 %v486, 2147483648
        %v579 = vsel %vm577, %v578, %v576
        %v580 = vrsqrt.pop %v487
        %v581 = vmul.f32 %v580, %v487
        %v582 = vmul.f32 %v581, %v580
        %v583 = vmul.f32 0.5, %v582
        %v584 = vsub.f32 1.5, %v583
        %v585 = vmul.f32 %v580, %v584
        %v586 = vmul.f32 %v487, %v585
        %vm587 = vcmp.eq.f32.partialorder %v487, inf
        %v588 = vsel %vm587, %v487, %v586
        %vm589 = vcmp.eq.f32.partialorder %v487, 0.0
        %v590 = vand.u32 %v487, 2147483648
        %v591 = vsel %vm589, %v590, %v588
        %v592 = vrsqrt.pop %v488
        %v593 = vmul.f32 %v592, %v488
        %v594 = vmul.f32 %v593, %v592
        %v595 = vmul.f32 0.5, %v594
        %v596 = vsub.f32 1.5, %v595
        %v597 = vmul.f32 %v592, %v596
        %v598 = vmul.f32 %v488, %v597
        %vm599 = vcmp.eq.f32.partialorder %v488, inf
        %v600 = vsel %vm599, %v488, %v598
        %vm601 = vcmp.eq.f32.partialorder %v488, 0.0
        %v602 = vand.u32 %v488, 2147483648
        %v603 = vsel %vm601, %v602, %v600
        %v604 = vrsqrt.pop %v489
        %v605 = vmul.f32 %v604, %v489
        %v606 = vmul.f32 %v605, %v604
        %v607 = vmul.f32 0.5, %v606
        %v608 = vsub.f32 1.5, %v607
        %v609 = vmul.f32 %v604, %v608
        %v610 = vmul.f32 %v489, %v609
        %vm611 = vcmp.eq.f32.partialorder %v489, inf
        %v612 = vsel %vm611, %v489, %v610
        %vm613 = vcmp.eq.f32.partialorder %v489, 0.0
        %v614 = vand.u32 %v489, 2147483648
        %v615 = vsel %vm613, %v614, %v612
        %v616 = vrsqrt.pop %v490
        %v617 = vmul.f32 %v616, %v490
        %v618 = vmul.f32 %v617, %v616
        %v619 = vmul.f32 0.5, %v618
        %v620 = vsub.f32 1.5, %v619
        %v621 = vmul.f32 %v616, %v620
        %v622 = vmul.f32 %v490, %v621
        %vm623 = vcmp.eq.f32.partialorder %v490, inf
        %v624 = vsel %vm623, %v490, %v622
        %vm625 = vcmp.eq.f32.partialorder %v490, 0.0
        %v626 = vand.u32 %v490, 2147483648
        %v627 = vsel %vm625, %v626, %v624
        %v628 = vrsqrt.pop %v491
        %v629 = vmul.f32 %v628, %v491
        %v630 = vmul.f32 %v629, %v628
        %v631 = vmul.f32 0.5, %v630
        %v632 = vsub.f32 1.5, %v631
        %v633 = vmul.f32 %v628, %v632
        %v634 = vmul.f32 %v491, %v633
        %vm635 = vcmp.eq.f32.partialorder %v491, inf
        %v636 = vsel %vm635, %v491, %v634
        %vm637 = vcmp.eq.f32.partialorder %v491, 0.0
        %v638 = vand.u32 %v491, 2147483648
        %v639 = vsel %vm637, %v638, %v636
        %v640 = vrsqrt.pop %v492
        %v641 = vmul.f32 %v640, %v492
        %v642 = vmul.f32 %v641, %v640
        %v643 = vmul.f32 0.5, %v642
        %v644 = vsub.f32 1.5, %v643
        %v645 = vmul.f32 %v640, %v644
        %v646 = vmul.f32 %v492, %v645
        %vm647 = vcmp.eq.f32.partialorder %v492, inf
        %v648 = vsel %vm647, %v492, %v646
        %vm649 = vcmp.eq.f32.partialorder %v492, 0.0
        %v650 = vand.u32 %v492, 2147483648
        %v651 = vsel %vm649, %v650, %v648
        %v652 = vrsqrt.pop %v493
        %v653 = vmul.f32 %v652, %v493
        %v654 = vmul.f32 %v653, %v652
        %v655 = vmul.f32 0.5, %v654
        %v656 = vsub.f32 1.5, %v655
        %v657 = vmul.f32 %v652, %v656
        %v658 = vmul.f32 %v493, %v657
        %vm659 = vcmp.eq.f32.partialorder %v493, inf
        %v660 = vsel %vm659, %v493, %v658
        %vm661 = vcmp.eq.f32.partialorder %v493, 0.0
        %v662 = vand.u32 %v493, 2147483648
        %v663 = vsel %vm661, %v662, %v660
        %665 = vset.pattern.permute.xlu0 0
        %666 = vperm.xlu0 %665, %v579
        %v667 = vpop.permute.xlu0 %666
        %670 = vset.pattern.permute.xlu0 0
        %671 = vperm.xlu0 %670, %v591
        %v672 = vpop.permute.xlu0 %671
        %675 = vset.pattern.permute.xlu0 0
        %676 = vperm.xlu0 %675, %v603
        %v677 = vpop.permute.xlu0 %676
        %680 = vset.pattern.permute.xlu0 0
        %681 = vperm.xlu0 %680, %v615
        %v682 = vpop.permute.xlu0 %681
        %685 = vset.pattern.permute.xlu0 0
        %686 = vperm.xlu0 %685, %v627
        %v687 = vpop.permute.xlu0 %686
        %690 = vset.pattern.permute.xlu0 0
        %691 = vperm.xlu0 %690, %v639
        %v692 = vpop.permute.xlu0 %691
        %695 = vset.pattern.permute.xlu0 0
        %696 = vperm.xlu0 %695, %v651
        %v697 = vpop.permute.xlu0 %696
        %700 = vset.pattern.permute.xlu0 0
        %701 = vperm.xlu0 %700, %v663
        %v702 = vpop.permute.xlu0 %701
        %v704 = vmul.f32 %v667, %v494
        %v705 = vmul.f32 %v672, %v495
        %v706 = vmul.f32 %v677, %v496
        %v707 = vmul.f32 %v682, %v497
        %v708 = vmul.f32 %v687, %v498
        %v709 = vmul.f32 %v692, %v499
        %v710 = vmul.f32 %v697, %v500
        %v711 = vmul.f32 %v702, %v501
        %v712 = vsub.f32 1.0, %v486
        %v713 = vsub.f32 1.0, %v487
        %v714 = vsub.f32 1.0, %v488
        %v715 = vsub.f32 1.0, %v489
        %v716 = vsub.f32 1.0, %v490
        %v717 = vsub.f32 1.0, %v491
        %v718 = vsub.f32 1.0, %v492
        %v719 = vsub.f32 1.0, %v493
        %v720 = vrsqrt.pop %v712
        %v721 = vmul.f32 %v720, %v712
        %v722 = vmul.f32 %v721, %v720
        %v723 = vmul.f32 0.5, %v722
        %v724 = vsub.f32 1.5, %v723
        %v725 = vmul.f32 %v720, %v724
        %v726 = vmul.f32 %v712, %v725
        %vm727 = vcmp.eq.f32.partialorder %v712, inf
        %v728 = vsel %vm727, %v712, %v726
        %vm729 = vcmp.eq.f32.partialorder %v712, 0.0
        %v730 = vand.u32 %v712, 2147483648
        %v731 = vsel %vm729, %v730, %v728
        %v732 = vrsqrt.pop %v713
        %v733 = vmul.f32 %v732, %v713
        %v734 = vmul.f32 %v733, %v732
        %v735 = vmul.f32 0.5, %v734
        %v736 = vsub.f32 1.5, %v735
        %v737 = vmul.f32 %v732, %v736
        %v738 = vmul.f32 %v713, %v737
        %vm739 = vcmp.eq.f32.partialorder %v713, inf
        %v740 = vsel %vm739, %v713, %v738
        %vm741 = vcmp.eq.f32.partialorder %v713, 0.0
        %v742 = vand.u32 %v713, 2147483648
        %v743 = vsel %vm741, %v742, %v740
        %v744 = vrsqrt.pop %v714
        %v745 = vmul.f32 %v744, %v714
        %v746 = vmul.f32 %v745, %v744
        %v747 = vmul.f32 0.5, %v746
        %v748 = vsub.f32 1.5, %v747
        %v749 = vmul.f32 %v744, %v748
        %v750 = vmul.f32 %v714, %v749
        %vm751 = vcmp.eq.f32.partialorder %v714, inf
        %v752 = vsel %vm751, %v714, %v750
        %vm753 = vcmp.eq.f32.partialorder %v714, 0.0
        %v754 = vand.u32 %v714, 2147483648
        %v755 = vsel %vm753, %v754, %v752
        %v756 = vrsqrt.pop %v715
        %v757 = vmul.f32 %v756, %v715
        %v758 = vmul.f32 %v757, %v756
        %v759 = vmul.f32 0.5, %v758
        %v760 = vsub.f32 1.5, %v759
        %v761 = vmul.f32 %v756, %v760
        %v762 = vmul.f32 %v715, %v761
        %vm763 = vcmp.eq.f32.partialorder %v715, inf
        %v764 = vsel %vm763, %v715, %v762
        %vm765 = vcmp.eq.f32.partialorder %v715, 0.0
        %v766 = vand.u32 %v715, 2147483648
        %v767 = vsel %vm765, %v766, %v764
        %v768 = vrsqrt.pop %v716
        %v769 = vmul.f32 %v768, %v716
        %v770 = vmul.f32 %v769, %v768
        %v771 = vmul.f32 0.5, %v770
        %v772 = vsub.f32 1.5, %v771
        %v773 = vmul.f32 %v768, %v772
        %v774 = vmul.f32 %v716, %v773
        %vm775 = vcmp.eq.f32.partialorder %v716, inf
        %v776 = vsel %vm775, %v716, %v774
        %vm777 = vcmp.eq.f32.partialorder %v716, 0.0
        %v778 = vand.u32 %v716, 2147483648
        %v779 = vsel %vm777, %v778, %v776
        %v780 = vrsqrt.pop %v717
        %v781 = vmul.f32 %v780, %v717
        %v782 = vmul.f32 %v781, %v780
        %v783 = vmul.f32 0.5, %v782
        %v784 = vsub.f32 1.5, %v783
        %v785 = vmul.f32 %v780, %v784
        %v786 = vmul.f32 %v717, %v785
        %vm787 = vcmp.eq.f32.partialorder %v717, inf
        %v788 = vsel %vm787, %v717, %v786
        %vm789 = vcmp.eq.f32.partialorder %v717, 0.0
        %v790 = vand.u32 %v717, 2147483648
        %v791 = vsel %vm789, %v790, %v788
        %v792 = vrsqrt.pop %v718
        %v793 = vmul.f32 %v792, %v718
        %v794 = vmul.f32 %v793, %v792
        %v795 = vmul.f32 0.5, %v794
        %v796 = vsub.f32 1.5, %v795
        %v797 = vmul.f32 %v792, %v796
        %v798 = vmul.f32 %v718, %v797
        %vm799 = vcmp.eq.f32.partialorder %v718, inf
        %v800 = vsel %vm799, %v718, %v798
        %vm801 = vcmp.eq.f32.partialorder %v718, 0.0
        %v802 = vand.u32 %v718, 2147483648
        %v803 = vsel %vm801, %v802, %v800
        %v804 = vrsqrt.pop %v719
        %v805 = vmul.f32 %v804, %v719
        %v806 = vmul.f32 %v805, %v804
        %v807 = vmul.f32 0.5, %v806
        %v808 = vsub.f32 1.5, %v807
        %v809 = vmul.f32 %v804, %v808
        %v810 = vmul.f32 %v719, %v809
        %vm811 = vcmp.eq.f32.partialorder %v719, inf
        %v812 = vsel %vm811, %v719, %v810
        %vm813 = vcmp.eq.f32.partialorder %v719, 0.0
        %v814 = vand.u32 %v719, 2147483648
        %v815 = vsel %vm813, %v814, %v812
        %817 = vset.pattern.permute.xlu0 0
        %818 = vperm.xlu0 %817, %v731
        %v819 = vpop.permute.xlu0 %818
        %822 = vset.pattern.permute.xlu0 0
        %823 = vperm.xlu0 %822, %v743
        %v824 = vpop.permute.xlu0 %823
        %827 = vset.pattern.permute.xlu0 0
        %828 = vperm.xlu0 %827, %v755
        %v829 = vpop.permute.xlu0 %828
        %832 = vset.pattern.permute.xlu0 0
        %833 = vperm.xlu0 %832, %v767
        %v834 = vpop.permute.xlu0 %833
        %837 = vset.pattern.permute.xlu0 0
        %838 = vperm.xlu0 %837, %v779
        %v839 = vpop.permute.xlu0 %838
        %842 = vset.pattern.permute.xlu0 0
        %843 = vperm.xlu0 %842, %v791
        %v844 = vpop.permute.xlu0 %843
        %847 = vset.pattern.permute.xlu0 0
        %848 = vperm.xlu0 %847, %v803
        %v849 = vpop.permute.xlu0 %848
        %852 = vset.pattern.permute.xlu0 0
        %853 = vperm.xlu0 %852, %v815
        %v854 = vpop.permute.xlu0 %853
        %v856 = vmul.f32 %v819, %v502
        %v857 = vmul.f32 %v824, %v503
        %v858 = vmul.f32 %v829, %v504
        %v859 = vmul.f32 %v834, %v505
        %v860 = vmul.f32 %v839, %v506
        %v861 = vmul.f32 %v844, %v507
        %v862 = vmul.f32 %v849, %v508
        %v863 = vmul.f32 %v854, %v509
        %v864 = vadd.f32 %v704, %v856
        %v865 = vadd.f32 %v705, %v857
        %v866 = vadd.f32 %v706, %v858
        %v867 = vadd.f32 %v707, %v859
        %v868 = vadd.f32 %v708, %v860
        %v869 = vadd.f32 %v709, %v861
        %v870 = vadd.f32 %v710, %v862
        %v871 = vadd.f32 %v711, %v863
        %v872 = vpack.c.bf16 %v864, %v864
        %v873 = vpack.c.bf16 %v865, %v865
        %v874 = vpack.c.bf16 %v866, %v866
        %v875 = vpack.c.bf16 %v867, %v867
        %v876 = vpack.c.bf16 %v868, %v868
        %v877 = vpack.c.bf16 %v869, %v869
        %v878 = vpack.c.bf16 %v870, %v870
        %v879 = vpack.c.bf16 %v871, %v871
        %v888 = vunpack.c.l.b16 %v872
        %v889 = vunpack.c.l.b16 %v873
        %v890 = vunpack.c.l.b16 %v874
        %v891 = vunpack.c.l.b16 %v875
        %v892 = vunpack.c.l.b16 %v876
        %v893 = vunpack.c.l.b16 %v877
        %v894 = vunpack.c.l.b16 %v878
        %v895 = vunpack.c.l.b16 %v879
        %v896 = vpack.c.b16 %v889, %v888
        %v897 = vpack.c.b16 %v891, %v890
        %v898 = vpack.c.b16 %v893, %v892
        %v899 = vpack.c.b16 %v895, %v894
        %v912 = vunpack.c.l.b16 %v510
        %v913 = vunpack.c.l.b16 %v511
        %v914 = vunpack.c.l.b16 %v512
        %v915 = vunpack.c.l.b16 %v513
        %v916 = vunpack.c.l.b16 %v514
        %v917 = vunpack.c.l.b16 %v515
        %v918 = vunpack.c.l.b16 %v516
        %v919 = vunpack.c.l.b16 %v517
        %v920 = vpack.c.b16 %v913, %v912
        %v921 = vpack.c.b16 %v915, %v914
        %v922 = vpack.c.b16 %v917, %v916
        %v923 = vpack.c.b16 %v919, %v918
        %v929 = vperm.slane %v550, 0
        %v963 = vunpack.c.l.b16 %v518
        %v964 = vunpack.c.l.b16 %v519
        %v965 = vunpack.c.l.b16 %v520
        %v966 = vunpack.c.l.b16 %v521
        %v967 = vunpack.c.l.b16 %v522
        %v968 = vunpack.c.l.b16 %v523
        %v969 = vunpack.c.l.b16 %v524
        %v970 = vunpack.c.l.b16 %v525
        %v971 = vunpack.c.l.b16 %v526
        %v972 = vunpack.c.l.b16 %v527
        %v973 = vunpack.c.l.b16 %v528
        %v974 = vunpack.c.l.b16 %v529
        %v975 = vunpack.c.l.b16 %v530
        %v976 = vunpack.c.l.b16 %v531
        %v977 = vunpack.c.l.b16 %v532
        %v978 = vunpack.c.l.b16 %v533
        %v979 = vunpack.c.l.b16 %v534
        %v980 = vunpack.c.l.b16 %v535
        %v981 = vunpack.c.l.b16 %v536
        %v982 = vunpack.c.l.b16 %v537
        %v983 = vunpack.c.l.b16 %v538
        %v984 = vunpack.c.l.b16 %v539
        %v985 = vunpack.c.l.b16 %v540
        %v986 = vunpack.c.l.b16 %v541
        %v987 = vunpack.c.l.b16 %v542
        %v988 = vunpack.c.l.b16 %v543
        %v989 = vunpack.c.l.b16 %v544
        %v990 = vunpack.c.l.b16 %v545
        %v991 = vunpack.c.l.b16 %v546
        %v992 = vunpack.c.l.b16 %v547
        %v993 = vunpack.c.l.b16 %v548
        %v994 = vunpack.c.l.b16 %v549
        %v995 = vpack.c.b16 %v964, %v963
        %v996 = vpack.c.b16 %v966, %v965
        %v997 = vpack.c.b16 %v968, %v967
        %v998 = vpack.c.b16 %v970, %v969
        %v999 = vpack.c.b16 %v972, %v971
        %v1000 = vpack.c.b16 %v974, %v973
        %v1001 = vpack.c.b16 %v976, %v975
        %v1002 = vpack.c.b16 %v978, %v977
        %v1003 = vpack.c.b16 %v980, %v979
        %v1004 = vpack.c.b16 %v982, %v981
        %v1005 = vpack.c.b16 %v984, %v983
        %v1006 = vpack.c.b16 %v986, %v985
        %v1007 = vpack.c.b16 %v988, %v987
        %v1008 = vpack.c.b16 %v990, %v989
        %v1009 = vpack.c.b16 %v992, %v991
        %v1010 = vpack.c.b16 %v994, %v993
        %1027 = vmatpush.bf16.msra.mxu0 %v1002
        %1028 = vmatpush.bf16.msra.mxu0 %v1001
        %1029 = vmatpush.bf16.msra.mxu0 %v1000
        %1030 = vmatpush.bf16.msra.mxu0 %v999
        %1031 = vmatpush.bf16.msra.mxu0 %v998
        %1032 = vmatpush.bf16.msra.mxu0 %v997
        %1033 = vmatpush.bf16.msra.mxu0 %v996
        %1034 = vmatpush.bf16.msra.mxu0 %v995
        %1035 = vmatmul.bf16.gmra.mxu0 %v896
        %v1036 = vpop.f32.mrf.mxu0
        %v1037 = vadd.f32 %v929, %v1036
        %v1038 = vpop.f32.mrf.mxu0
        %v1039 = vadd.f32 %v929, %v1038
        %1040 = vmatmul.bf16.gmra.mxu0 %v897
        %v1041 = vpop.f32.mrf.mxu0
        %v1042 = vadd.f32 %v929, %v1041
        %v1043 = vpop.f32.mrf.mxu0
        %v1044 = vadd.f32 %v929, %v1043
        %1045 = vmatmul.bf16.gmra.mxu0 %v898
        %v1046 = vpop.f32.mrf.mxu0
        %v1047 = vadd.f32 %v929, %v1046
        %v1048 = vpop.f32.mrf.mxu0
        %v1049 = vadd.f32 %v929, %v1048
        %1050 = vmatmul.bf16.gmra.mxu0 %v899
        %v1051 = vpop.f32.mrf.mxu0
        %v1052 = vadd.f32 %v929, %v1051
        %v1053 = vpop.f32.mrf.mxu0
        %v1054 = vadd.f32 %v929, %v1053
        %1055 = vdwg.mxu0
        %1056 = vmatpush.bf16.msra.mxu0 %v1010
        %1057 = vmatpush.bf16.msra.mxu0 %v1009
        %1058 = vmatpush.bf16.msra.mxu0 %v1008
        %1059 = vmatpush.bf16.msra.mxu0 %v1007
        %1060 = vmatpush.bf16.msra.mxu0 %v1006
        %1061 = vmatpush.bf16.msra.mxu0 %v1005
        %1062 = vmatpush.bf16.msra.mxu0 %v1004
        %1063 = vmatpush.bf16.msra.mxu0 %v1003
        %1064 = vmatmul.bf16.gmra.mxu0 %v920
        %v1065 = vpop.f32.mrf.mxu0
        %v1066 = vadd.f32 %v1037, %v1065
        %v1067 = vpop.f32.mrf.mxu0
        %v1068 = vadd.f32 %v1039, %v1067
        %1069 = vmatmul.bf16.gmra.mxu0 %v921
        %v1070 = vpop.f32.mrf.mxu0
        %v1071 = vadd.f32 %v1042, %v1070
        %v1072 = vpop.f32.mrf.mxu0
        %v1073 = vadd.f32 %v1044, %v1072
        %1074 = vmatmul.bf16.gmra.mxu0 %v922
        %v1075 = vpop.f32.mrf.mxu0
        %v1076 = vadd.f32 %v1047, %v1075
        %v1077 = vpop.f32.mrf.mxu0
        %v1078 = vadd.f32 %v1049, %v1077
        %1079 = vmatmul.bf16.gmra.mxu0 %v923
        %v1080 = vpop.f32.mrf.mxu0
        %v1081 = vadd.f32 %v1052, %v1080
        %v1082 = vpop.f32.mrf.mxu0
        %v1083 = vadd.f32 %v1054, %v1082
        %1084 = vdwg.mxu0
        %v1085 = vmax.f32 %v1066, 0.0
        %v1086 = vmax.f32 %v1068, 0.0
        %v1087 = vmax.f32 %v1071, 0.0
        %v1088 = vmax.f32 %v1073, 0.0
        %v1089 = vmax.f32 %v1076, 0.0
        %v1090 = vmax.f32 %v1078, 0.0
        %v1091 = vmax.f32 %v1081, 0.0
        %v1092 = vmax.f32 %v1083, 0.0
        %v1093 = vpack.c.bf16 %v1086, %v1085
        %v1094 = vpack.c.bf16 %v1088, %v1087
        %v1095 = vpack.c.bf16 %v1090, %v1089
        %v1096 = vpack.c.bf16 %v1092, %v1091
        %v1098 = vperm.slane %v567, 0
        %v1116 = vunpack.c.l.b16 %v551
        %v1117 = vunpack.c.l.b16 %v552
        %v1118 = vunpack.c.l.b16 %v553
        %v1119 = vunpack.c.l.b16 %v554
        %v1120 = vunpack.c.l.b16 %v555
        %v1121 = vunpack.c.l.b16 %v556
        %v1122 = vunpack.c.l.b16 %v557
        %v1123 = vunpack.c.l.b16 %v558
        %v1124 = vunpack.c.l.b16 %v559
        %v1125 = vunpack.c.l.b16 %v560
        %v1126 = vunpack.c.l.b16 %v561
        %v1127 = vunpack.c.l.b16 %v562
        %v1128 = vunpack.c.l.b16 %v563
        %v1129 = vunpack.c.l.b16 %v564
        %v1130 = vunpack.c.l.b16 %v565
        %v1131 = vunpack.c.l.b16 %v566
        %v1132 = vpack.c.b16 %v1117, %v1116
        %v1133 = vpack.c.b16 %v1119, %v1118
        %v1134 = vpack.c.b16 %v1121, %v1120
        %v1135 = vpack.c.b16 %v1123, %v1122
        %v1136 = vpack.c.b16 %v1125, %v1124
        %v1137 = vpack.c.b16 %v1127, %v1126
        %v1138 = vpack.c.b16 %v1129, %v1128
        %v1139 = vpack.c.b16 %v1131, %v1130
        %1148 = vmatpush.bf16.msra.mxu0 %v1139
        %1149 = vmatpush.bf16.msra.mxu0 %v1138
        %1150 = vmatpush.bf16.msra.mxu0 %v1137
        %1151 = vmatpush.bf16.msra.mxu0 %v1136
        %1152 = vmatpush.bf16.msra.mxu0 %v1135
        %1153 = vmatpush.bf16.msra.mxu0 %v1134
        %1154 = vmatpush.bf16.msra.mxu0 %v1133
        %1155 = vmatpush.bf16.msra.mxu0 %v1132
        %1156 = vmatmul.bf16.gmra.mxu0 %v1093
        %v1157 = vpop.f32.mrf.mxu0
        %v1158 = vadd.f32 %v1098, %v1157
        %v1159 = vpop.f32.mrf.mxu0
        %v1160 = vadd.f32 %v1098, %v1159
        %1161 = vmatmul.bf16.gmra.mxu0 %v1094
        %v1162 = vpop.f32.mrf.mxu0
        %v1163 = vadd.f32 %v1098, %v1162
        %v1164 = vpop.f32.mrf.mxu0
        %v1165 = vadd.f32 %v1098, %v1164
        %1166 = vmatmul.bf16.gmra.mxu0 %v1095
        %v1167 = vpop.f32.mrf.mxu0
        %v1168 = vadd.f32 %v1098, %v1167
        %v1169 = vpop.f32.mrf.mxu0
        %v1170 = vadd.f32 %v1098, %v1169
        %1171 = vmatmul.bf16.gmra.mxu0 %v1096
        %v1172 = vpop.f32.mrf.mxu0
        %v1173 = vadd.f32 %v1098, %v1172
        %v1174 = vpop.f32.mrf.mxu0
        %v1175 = vadd.f32 %v1098, %v1174
        %1176 = vdwg.mxu0
        %1177 = vst [vmem:[%s463] sm:$0xff] %v1158
        %1178 = vst [vmem:[%s463 + $0x8] sm:$0xff] %v1160
        %1179 = vst [vmem:[%s463 + $0x10] sm:$0xff] %v1163
        %1180 = vst [vmem:[%s463 + $0x18] sm:$0xff] %v1165
        %1181 = vst [vmem:[%s463 + $0x20] sm:$0xff] %v1168
        %1182 = vst [vmem:[%s463 + $0x28] sm:$0xff] %v1170
        %1183 = vst [vmem:[%s463 + $0x30] sm:$0xff] %v1173
        %1184 = vst [vmem:[%s463 + $0x38] sm:$0xff] %v1175
        %v1185 = vsub.f32 %v1158, %v494
        %v1186 = vsub.f32 %v1160, %v495
        %v1187 = vsub.f32 %v1163, %v496
        %v1188 = vsub.f32 %v1165, %v497
        %v1189 = vsub.f32 %v1168, %v498
        %v1190 = vsub.f32 %v1170, %v499
        %v1191 = vsub.f32 %v1173, %v500
        %v1192 = vsub.f32 %v1175, %v501
        %v1193 = vmul.f32 %v1185, %v1185
        %v1194 = vmul.f32 %v1186, %v1186
        %v1195 = vmul.f32 %v1187, %v1187
        %v1196 = vmul.f32 %v1188, %v1188
        %v1197 = vmul.f32 %v1189, %v1189
        %v1198 = vmul.f32 %v1190, %v1190
        %v1199 = vmul.f32 %v1191, %v1191
        %v1200 = vmul.f32 %v1192, %v1192
        %v1201 = vadd.f32 %v1193, %v1194
        %v1202 = vadd.f32 %v1201, %v1195
        %v1203 = vadd.f32 %v1202, %v1196
        %v1204 = vadd.f32 %v1203, %v1197
        %v1205 = vadd.f32 %v1204, %v1198
        %v1206 = vadd.f32 %v1205, %v1199
        %v1207 = vadd.f32 %v1206, %v1200
        %1208 = vst [vmem:[%s470] sm:$0xff] %v1207
        %s1209 = sand.u32 %s230, 1
        %s1210 = scalar_lea.sflag [#allocation4], %s1209
        %s1211 = sand.u32 %s230, 1
        %s1212 = smul.addr %s1211, 64
        %s1213 = scalar_lea.vmem [#allocation10], %s1212
        %s1214 = sand.u32 %s256, 1
        %s1215 = scalar_lea.sflag [#allocation12], %s1214
        %s1216 = sand.u32 %s256, 1
        %s1217 = smul.addr %s1216, 8
        %s1218 = scalar_lea.vmem [#allocation11], %s1217
        // Predicated region
        $region69: #{tpu_custom_call.1} parent=51 // pred_check
          %p1219 = pneg %p240
        $region70: #{tpu_custom_call.1} parent=51 // pred_check_branch
          %1221 = sbr.rel (%p1219) target = $region72
        $region71: #{tpu_custom_call.1} parent=51 // pred_region
          %s1222 = smul.u32 8, %s34
          %1224 = vsyncadd %s1210, 0
          %s1225 = smul.addr %s1222, 8
          %s1226 = scalar_lea.hbm %s8, %s1225
          %s1227 = sshll.u32 %s1213, 4
          %s1228 = int_to_ptr.vmem [resolvable:$true] %s1227
          %s1229 = sshll.u32 %s1226, 4
          %s1230 = int_to_ptr.hbm [resolvable:$true] %s1229
          %1235 = dma.vmem_to_hbm [thread:$0]  %s1228, 1024, %s1230, %s1210, 128, 128, 8
        $region72: #{tpu_custom_call.1} parent=51 // pred_fallthru
          _
        // Predicated region
        $region73: #{tpu_custom_call.1} parent=51 // pred_check
          %p1236 = pneg %p266
        $region74: #{tpu_custom_call.1} parent=51 // pred_check_branch
          %1238 = sbr.rel (%p1236) target = $region76
        $region75: #{tpu_custom_call.1} parent=51 // pred_region
          %1240 = vsyncadd %s1215, 0
          %s1241 = smul.addr %s34, 8
          %s1242 = scalar_lea.hbm %s9, %s1241
          %s1244 = sshll.u32 %s1218, 4
          %s1245 = int_to_ptr.vmem [resolvable:$true] %s1244
          %s1246 = sshll.u32 %s1242, 4
          %s1247 = int_to_ptr.hbm [resolvable:$true] %s1246
          %1249 = dma.vmem_to_hbm [thread:$0]  %s1245, 128, %s1247, %s1215
        $region76: #{tpu_custom_call.1} parent=51 // pred_fallthru
          _
      $region52: #{tpu_custom_call.1} parent=5 // pred_fallthru
        _
      %p1250 = scmp.le.s32.totalorder 2, %s29
      // Predicated region
      $region77: #{tpu_custom_call.1} parent=5 // pred_check
        %p1251 = pneg %p1250
      $region78: #{tpu_custom_call.1} parent=5 // pred_check_branch
        %1253 = sbr.rel (%p1251) target = $region80
      $region79: #{tpu_custom_call.1} parent=5 // pred_region
        %s1254 = ssub.s32 %s29, 2
        // Predicated region
        $region81: #{tpu_custom_call.1} parent=79 // pred_check
          %p1255 = pneg %p246
        $region82: #{tpu_custom_call.1} parent=79 // pred_check_branch
          %1257 = sbr.rel (%p1255) target = $region84
        $region83: #{tpu_custom_call.1} parent=79 // pred_region
          %s1258 = sand.u32 %s231, 1
          %s1259 = scalar_lea.sflag [#allocation4], %s1258
          %s1260 = sand.u32 %s231, 1
          %s1261 = smul.addr %s1260, 64
          %s1262 = scalar_lea.vmem [#allocation10], %s1261
          %1264 = dma.done %s1259, 1024
        $region84: #{tpu_custom_call.1} parent=79 // pred_fallthru
          _
        // Predicated region
        $region85: #{tpu_custom_call.1} parent=79 // pred_check
          %p1265 = pneg %p272
        $region86: #{tpu_custom_call.1} parent=79 // pred_check_branch
          %1267 = sbr.rel (%p1265) target = $region88
        $region87: #{tpu_custom_call.1} parent=79 // pred_region
          %s1268 = sand.u32 %s257, 1
          %s1269 = scalar_lea.sflag [#allocation12], %s1268
          %s1270 = sand.u32 %s257, 1
          %s1271 = smul.addr %s1270, 8
          %s1272 = scalar_lea.vmem [#allocation11], %s1271
          %1274 = dma.done %s1269, 128
        $region88: #{tpu_custom_call.1} parent=79 // pred_fallthru
          _
      $region80: #{tpu_custom_call.1} parent=5 // pred_fallthru
        _
    $region6: #{tpu_custom_call.1} parent=1 // loop_footer
      %s33 = sadd.s32 1, %s29
    $region7: #{tpu_custom_call.1} parent=1 // loop_footer_branch
      %28 = sbr.rel target = $region3
    $region8: #{tpu_custom_call.1} parent=1 // loop_exit
      _
    %1275 = vsyncpa [#allocation3], 1
    %s1276 = scalar_lea.sflag [#allocation3], 1
    %1277 = vsyncpa %s1276, 1
    %1278 = vsyncpa [#allocation6], 1
    %s1279 = scalar_lea.sflag [#allocation6], 1
    %1280 = vsyncpa %s1279, 1
    %1281 = vsyncpa [#allocation9], 1
    %1282 = vsyncpa [#allocation4], 1
    %s1283 = scalar_lea.sflag [#allocation4], 1
    %1284 = vsyncpa %s1283, 1
    %1285 = vsyncpa [#allocation12], 1
    %s1286 = scalar_lea.sflag [#allocation12], 1
    %1287 = vsyncpa %s1286, 1

</llo_original>
